<compile_context>
chip_gen: v7x
topology: tpu7x:2x2x1
jax: 0.10.0
libtpu: 0.0.40
codegen_flags: <defaults>
</compile_context>

<pallas_src>
import jax
import jax.numpy as jnp
from jax.experimental import pallas as pl
from jax.experimental.pallas import tpu as pltpu

SMALL_VAL = 1e-6
BETA = 1.0

TARGET_BLOCK_PAIR_BYTES = 8 * 1024 * 1024   # logits+labels bytes per grid step
VMEM_LIMIT_CAP = 32 * 1024 * 1024           # <= half of v7x per-TC VMEM


def _make_f1_kernel(n_rows, tile_n, small_val, beta):
    beta2 = float(beta) * float(beta)
    needs_row_mask = (n_rows % tile_n) != 0
    vreg_acc = (tile_n % 8) == 0   # can we accumulate as stacks of (8, D) vregs?

    def kernel(logits_ref, labels_ref, fs_ref, sp_ref, sl_ref, tp_ref):
        n_i = pl.program_id(1)
        last_n = pl.num_programs(1) - 1

        @pl.when(n_i == 0)
        def _init():
            sp_ref[...] = jnp.zeros_like(sp_ref)
            sl_ref[...] = jnp.zeros_like(sl_ref)
            tp_ref[...] = jnp.zeros_like(tp_ref)

        x = logits_ref[...].astype(jnp.float32)
        l = labels_ref[...].astype(jnp.float32)
        p = jax.nn.sigmoid(x)   # EUP transcendental; hidden under the DMA

        def accumulate(p_v, l_v):
            # Pure element-wise (VALU) adds into the (8, tile_d) partial
            # accumulators; the 8->1 sublane (XLU) reduce happens once, in the
            # finalize step.  Also improves f32 summation accuracy for big N.
            tile_d = p_v.shape[-1]
            if vreg_acc:
                p3 = p_v.reshape(tile_n // 8, 8, tile_d)
                l3 = l_v.reshape(tile_n // 8, 8, tile_d)
                sp_ref[...] += jnp.sum(p3, axis=0)
                sl_ref[...] += jnp.sum(l3, axis=0)
                tp_ref[...] += jnp.sum(l3 * p3, axis=0)
            else:
                sp_ref[0:1, :] += jnp.sum(p_v, axis=0, keepdims=True)
                sl_ref[0:1, :] += jnp.sum(l_v, axis=0, keepdims=True)
                tp_ref[0:1, :] += jnp.sum(l_v * p_v, axis=0, keepdims=True)

        if needs_row_mask:
            @pl.when(n_i < last_n)          # full tiles: zero masking overhead
            def _full():
                accumulate(p, l)

            @pl.when(n_i == last_n)         # only the last tile is partial
            def _partial():
                row = (jax.lax.broadcasted_iota(jnp.int32, (tile_n, 1), 0)
                       + n_i * tile_n)
                valid = row < n_rows
                accumulate(jnp.where(valid, p, 0.0), jnp.where(valid, l, 0.0))
        else:
            accumulate(p, l)

        @pl.when(n_i == last_n)
        def _finalize():
            sp = jnp.sum(sp_ref[...], axis=0, keepdims=True)
            sl = jnp.sum(sl_ref[...], axis=0, keepdims=True)
            tp = jnp.sum(tp_ref[...], axis=0, keepdims=True)
            num_pos = sp + small_val
            num_pos_hat = sl + small_val
            precise = tp / num_pos
            recall = tp / num_pos_hat
            fs = (1.0 + beta2) * precise * recall / (
                beta2 * precise + recall + small_val)
            fs_ref[...] = fs

    return kernel


def _tpu_info():
    try:
        return pltpu.get_tpu_info()
    except Exception:
        return None


def _vmem_capacity_bytes(info):
    cap = getattr(info, "vmem_capacity_bytes", None) if info is not None else None
    if cap:
        return int(cap)
    return 64 * 1024 * 1024   # conservative default (v7x per-TC VMEM)


def _num_tensorcores(info):
    if info is None:
        return 1
    for attr in ("num_cores", "num_tensorcores", "tensorcore_count",
                 "core_count", "num_cores_per_chip"):
        v = getattr(info, attr, None)
        if isinstance(v, int) and v > 0:
            return int(v)
    return 1


def f1_loss(logits, labels, *, small_val=SMALL_VAL, beta=BETA, tile_n=None):
    """F1 loss (1 - mean per-class F1) as a Pallas TPU kernel.

    logits/labels: [N, D], any dtype (compute is f32).  Bandwidth contract:
    prefer int8/bool labels and bf16 logits in HBM for a ~1.6-2.6x speedup.
    """
    assert logits.shape == labels.shape and logits.ndim == 2
    n_rows, d = logits.shape
    in_itemsize = logits.dtype.itemsize + labels.dtype.itemsize

    info = _tpu_info()
    vmem_cap = _vmem_capacity_bytes(info)
    num_cores = _num_tensorcores(info)

    # ---- D (class) tiling ---------------------------------------------------
    # Default: keep the full width (contiguous DMA, fewest grid steps).
    tile_d, num_d = d, 1
    use_core_parallel = False
    if (num_cores > 1 and d % (128 * num_cores) == 0
            and n_rows * d * in_itemsize >= 32 * 1024 * 1024):
        # v7x: exactly one D block per TensorCore.
        tile_d, num_d = d // num_cores, num_cores
        use_core_parallel = True
    elif d % 128 == 0 and 32 * d * in_itemsize > TARGET_BLOCK_PAIR_BYTES:
        # Pathologically wide D: split so a >=32-row block pair fits the budget.
        units = d // 128
        for k in range(units, 0, -1):
            if units % k == 0 and 32 * (k * 128) * in_itemsize <= TARGET_BLOCK_PAIR_BYTES:
                tile_d, num_d = k * 128, d // (k * 128)
                break
    # TODO(synk): when num_cores > 1 but D cannot be split (num_d == 1), split N
    # across cores with per-core (3, D) partial sums to engage both v7x TCs.

    # ---- N (batch) tiling: big byte-sized blocks, 32-row aligned -------------
    if tile_n is None:
        tile_n = TARGET_BLOCK_PAIR_BYTES // max(1, tile_d * in_itemsize)
    tile_n = int(tile_n)
    if tile_n >= n_rows:
        tile_n = n_rows                          # full-dim block: no alignment rule
    else:
        tile_n = max(32, (tile_n // 32) * 32)    # native tiling for f32/bf16/int8
        if tile_n >= n_rows:
            tile_n = n_rows
    num_n = pl.cdiv(n_rows, tile_n)

    # ---- VMEM limit: actual need, clamped (safe on v7x 64 MiB per-TC) --------
    block_pair_bytes = tile_n * tile_d * in_itemsize
    need = (2 * block_pair_bytes            # double-buffered input blocks
            + 2 * tile_d * 4                # double-buffered (1, tile_d) output
            + 3 * 8 * tile_d * 4            # three (8, tile_d) f32 accumulators
            + 2 * 1024 * 1024)              # compiler slack
    vmem_limit = int(min(max(need, 8 * 1024 * 1024), VMEM_LIMIT_CAP))
    if need > VMEM_LIMIT_CAP:               # pathological shapes only
        vmem_limit = int(min(need, (vmem_cap * 3) // 4))

    kernel = _make_f1_kernel(n_rows, tile_n, small_val, beta)

    def run(dim_semantics):
        return pl.pallas_call(
            kernel,
            out_shape=jax.ShapeDtypeStruct((1, d), jnp.float32),
            grid_spec=pltpu.PrefetchScalarGridSpec(
                num_scalar_prefetch=0,
                grid=(num_d, num_n),
                in_specs=[
                    pl.BlockSpec((tile_n, tile_d), lambda di, ni: (ni, di)),
                    pl.BlockSpec((tile_n, tile_d), lambda di, ni: (ni, di)),
                ],
                out_specs=pl.BlockSpec((1, tile_d), lambda di, ni: (0, di)),
                scratch_shapes=[
                    pltpu.VMEM((8, tile_d), jnp.float32),  # partial sum(sigmoid(x))
                    pltpu.VMEM((8, tile_d), jnp.float32),  # partial sum(labels)
                    pltpu.VMEM((8, tile_d), jnp.float32),  # partial sum(l * p)
                ],
            ),
            compiler_params=pltpu.CompilerParams(
                dimension_semantics=dim_semantics,
                vmem_limit_bytes=vmem_limit,
            ),
        )(logits, labels)

    if use_core_parallel:
        try:
            fs = run((pltpu.CORE_PARALLEL, pltpu.ARBITRARY))
        except Exception:
            fs = run(("parallel", "arbitrary"))
    else:
        fs = run(("parallel", "arbitrary"))

    # Tiny final mean over D and "1 - loss" stay in the wrapper (keeps the
    # kernel output lane-dense; avoids a (1, 1) masked store).
    return 1.0 - jnp.sum(fs) / d


def f1_loss_ref(logits, labels, small_val=SMALL_VAL, beta=BETA):
    # Pure-JAX reference mirroring the PyTorch forward exactly.
    p = jax.nn.sigmoid(logits.astype(jnp.float32))
    l = labels.astype(jnp.float32)
    num_pos = jnp.sum(p, axis=0) + small_val
    num_pos_hat = jnp.sum(l, axis=0) + small_val
    tp = jnp.sum(l * p, axis=0)
    precise = tp / num_pos
    recall = tp / num_pos_hat
    beta2 = beta * beta
    fs = (1.0 + beta2) * precise * recall / (beta2 * precise + recall + small_val)
    return 1.0 - jnp.sum(fs) / fs.shape[0]


if __name__ == "__main__":
    key = jax.random.PRNGKey(0)
    k1, k2, k3, k4 = jax.random.split(key, 4)

    # Small shape consistent with the module spec: [N, D].
    N, D = 8, 32
    logits = jax.random.normal(k1, (N, D), dtype=jnp.float32)
    labels = (jax.random.uniform(k2, (N, D)) > 0.5).astype(jnp.float32)

    loss = f1_loss(logits, labels)
    jax.block_until_ready(loss)
    ref = f1_loss_ref(logits, labels)
    assert jnp.allclose(loss, ref, atol=1e-5, rtol=1e-4), (loss, ref)

    # Second case: tiled/pipelined N path with a partial (masked) last tile,
    # full-width D block, and narrow input dtypes (bf16 logits + int8 labels)
    # exercising the bandwidth-saving caller contract.
    N2, D2 = 200, 384
    logits2 = jax.random.normal(k3, (N2, D2), dtype=jnp.float32).astype(jnp.bfloat16)
    labels2 = (jax.random.uniform(k4, (N2, D2)) > 0.5).astype(jnp.int8)

    loss2 = f1_loss(logits2, labels2, tile_n=64)
    jax.block_until_ready(loss2)
    ref2 = f1_loss_ref(logits2, labels2)
    assert jnp.allclose(loss2, ref2, atol=1e-5, rtol=1e-4), (loss2, ref2)

    print("KERNEL_OK")
</pallas_src>

<mosaic_0001>
module attributes {stable_mosaic.version = 11 : i64} {
  func.func @kernel(%arg0: i32, %arg1: i32, %arg2: memref<8x32xf32, #tpu.memory_space<vmem>>, %arg3: memref<8x32xf32, #tpu.memory_space<vmem>>, %arg4: memref<1x32xf32, #tpu.memory_space<vmem>>, %arg5: memref<8x32xf32, #tpu.memory_space<vmem>>, %arg6: memref<8x32xf32, #tpu.memory_space<vmem>>, %arg7: memref<8x32xf32, #tpu.memory_space<vmem>>) attributes {dimension_semantics = [#tpu.dimension_semantics<parallel>, #tpu.dimension_semantics<arbitrary>], iteration_bounds = array<i64: 1, 1>, scalar_prefetch = 0 : i64, scratch_operands = 3 : i64, tpu.core_type = #tpu.core_type<tc>, window_params = [{transform_indices = @transform_0, window_bounds = array<i64: 8, 32>}, {transform_indices = @transform_1, window_bounds = array<i64: 8, 32>}, {transform_indices = @transform_2, window_bounds = array<i64: 1, 32>}]} {
    %c0_i32 = arith.constant 0 : i32
    %0 = arith.cmpi eq, %arg1, %c0_i32 : i32
    %1 = arith.extui %0 : i1 to i32
    %c0_i32_0 = arith.constant 0 : i32
    %2 = arith.cmpi ne, %1, %c0_i32_0 : i32
    scf.if %2 {
      %cst_21 = arith.constant 0.000000e+00 : f32
      %28 = vector.broadcast %cst_21 : f32 to vector<8x32xf32>
      %c0_22 = arith.constant 0 : index
      %c0_23 = arith.constant 0 : index
      %29 = vector.load %arg5[%c0_22, %c0_23] : memref<8x32xf32, #tpu.memory_space<vmem>>, vector<8x32xf32>
      tpu.vector_store %arg5[%c0_22, %c0_23], %28 {strides = array<i32>} : memref<8x32xf32, #tpu.memory_space<vmem>>, vector<8x32xf32>,
      %cst_24 = arith.constant 0.000000e+00 : f32
      %30 = vector.broadcast %cst_24 : f32 to vector<8x32xf32>
      %c0_25 = arith.constant 0 : index
      %c0_26 = arith.constant 0 : index
      %31 = vector.load %arg6[%c0_25, %c0_26] : memref<8x32xf32, #tpu.memory_space<vmem>>, vector<8x32xf32>
      tpu.vector_store %arg6[%c0_25, %c0_26], %30 {strides = array<i32>} : memref<8x32xf32, #tpu.memory_space<vmem>>, vector<8x32xf32>,
      %cst_27 = arith.constant 0.000000e+00 : f32
      %32 = vector.broadcast %cst_27 : f32 to vector<8x32xf32>
      %c0_28 = arith.constant 0 : index
      %c0_29 = arith.constant 0 : index
      %33 = vector.load %arg7[%c0_28, %c0_29] : memref<8x32xf32, #tpu.memory_space<vmem>>, vector<8x32xf32>
      tpu.vector_store %arg7[%c0_28, %c0_29], %32 {strides = array<i32>} : memref<8x32xf32, #tpu.memory_space<vmem>>, vector<8x32xf32>,
    } else {
    }
    %c0 = arith.constant 0 : index
    %c0_1 = arith.constant 0 : index
    %3 = vector.load %arg2[%c0, %c0_1] : memref<8x32xf32, #tpu.memory_space<vmem>>, vector<8x32xf32>
    %c0_2 = arith.constant 0 : index
    %c0_3 = arith.constant 0 : index
    %4 = vector.load %arg3[%c0_2, %c0_3] : memref<8x32xf32, #tpu.memory_space<vmem>>, vector<8x32xf32>
    %5 = arith.negf %3 : vector<8x32xf32>
    %6 = math.exp %5 : vector<8x32xf32>
    %cst = arith.constant 1.000000e+00 : f32
    %7 = vector.broadcast %cst : f32 to vector<8x32xf32>
    %8 = arith.addf %7, %6 : vector<8x32xf32>
    %9 = arith.divf %7, %8 : vector<8x32xf32>
    %10 = vector.shape_cast %9 : vector<8x32xf32> to vector<1x8x32xf32>
    %11 = vector.shape_cast %4 : vector<8x32xf32> to vector<1x8x32xf32>
    %c0_4 = arith.constant 0 : index
    %c0_5 = arith.constant 0 : index
    %12 = vector.load %arg5[%c0_4, %c0_5] : memref<8x32xf32, #tpu.memory_space<vmem>>, vector<8x32xf32>
    %cst_6 = arith.constant dense<0.000000e+00> : vector<8x32xf32>
    %13 = vector.multi_reduction <add>, %10, %cst_6 [0] : vector<1x8x32xf32> to vector<8x32xf32>
    %14 = arith.addf %12, %13 : vector<8x32xf32>
    %c0_7 = arith.constant 0 : index
    %c0_8 = arith.constant 0 : index
    %15 = vector.load %arg5[%c0_7, %c0_8] : memref<8x32xf32, #tpu.memory_space<vmem>>, vector<8x32xf32>
    tpu.vector_store %arg5[%c0_7, %c0_8], %14 {strides = array<i32>} : memref<8x32xf32, #tpu.memory_space<vmem>>, vector<8x32xf32>,
    %c0_9 = arith.constant 0 : index
    %c0_10 = arith.constant 0 : index
    %16 = vector.load %arg6[%c0_9, %c0_10] : memref<8x32xf32, #tpu.memory_space<vmem>>, vector<8x32xf32>
    %cst_11 = arith.constant dense<0.000000e+00> : vector<8x32xf32>
    %17 = vector.multi_reduction <add>, %11, %cst_11 [0] : vector<1x8x32xf32> to vector<8x32xf32>
    %18 = arith.addf %16, %17 : vector<8x32xf32>
    %c0_12 = arith.constant 0 : index
    %c0_13 = arith.constant 0 : index
    %19 = vector.load %arg6[%c0_12, %c0_13] : memref<8x32xf32, #tpu.memory_space<vmem>>, vector<8x32xf32>
    tpu.vector_store %arg6[%c0_12, %c0_13], %18 {strides = array<i32>} : memref<8x32xf32, #tpu.memory_space<vmem>>, vector<8x32xf32>,
    %c0_14 = arith.constant 0 : index
    %c0_15 = arith.constant 0 : index
    %20 = vector.load %arg7[%c0_14, %c0_15] : memref<8x32xf32, #tpu.memory_space<vmem>>, vector<8x32xf32>
    %21 = arith.mulf %11, %10 : vector<1x8x32xf32>
    %cst_16 = arith.constant dense<0.000000e+00> : vector<8x32xf32>
    %22 = vector.multi_reduction <add>, %21, %cst_16 [0] : vector<1x8x32xf32> to vector<8x32xf32>
    %23 = arith.addf %20, %22 : vector<8x32xf32>
    %c0_17 = arith.constant 0 : index
    %c0_18 = arith.constant 0 : index
    %24 = vector.load %arg7[%c0_17, %c0_18] : memref<8x32xf32, #tpu.memory_space<vmem>>, vector<8x32xf32>
    tpu.vector_store %arg7[%c0_17, %c0_18], %23 {strides = array<i32>} : memref<8x32xf32, #tpu.memory_space<vmem>>, vector<8x32xf32>,
    %c0_i32_19 = arith.constant 0 : i32
    %25 = arith.cmpi eq, %arg1, %c0_i32_19 : i32
    %26 = arith.extui %25 : i1 to i32
    %c0_i32_20 = arith.constant 0 : i32
    %27 = arith.cmpi ne, %26, %c0_i32_20 : i32
    scf.if %27 {
      %c0_21 = arith.constant 0 : index
      %c0_22 = arith.constant 0 : index
      %28 = vector.load %arg5[%c0_21, %c0_22] : memref<8x32xf32, #tpu.memory_space<vmem>>, vector<8x32xf32>
      %cst_23 = arith.constant dense<0.000000e+00> : vector<32xf32>
      %29 = vector.multi_reduction <add>, %28, %cst_23 [0] : vector<8x32xf32> to vector<32xf32>
      %30 = vector.shape_cast %29 : vector<32xf32> to vector<1x32xf32>
      %c0_24 = arith.constant 0 : index
      %c0_25 = arith.constant 0 : index
      %31 = vector.load %arg6[%c0_24, %c0_25] : memref<8x32xf32, #tpu.memory_space<vmem>>, vector<8x32xf32>
      %cst_26 = arith.constant dense<0.000000e+00> : vector<32xf32>
      %32 = vector.multi_reduction <add>, %31, %cst_26 [0] : vector<8x32xf32> to vector<32xf32>
      %33 = vector.shape_cast %32 : vector<32xf32> to vector<1x32xf32>
      %c0_27 = arith.constant 0 : index
      %c0_28 = arith.constant 0 : index
      %34 = vector.load %arg7[%c0_27, %c0_28] : memref<8x32xf32, #tpu.memory_space<vmem>>, vector<8x32xf32>
      %cst_29 = arith.constant dense<0.000000e+00> : vector<32xf32>
      %35 = vector.multi_reduction <add>, %34, %cst_29 [0] : vector<8x32xf32> to vector<32xf32>
      %36 = vector.shape_cast %35 : vector<32xf32> to vector<1x32xf32>
      %cst_30 = arith.constant 9.99999997E-7 : f32
      %37 = vector.broadcast %cst_30 : f32 to vector<1x32xf32>
      %38 = arith.addf %30, %37 : vector<1x32xf32>
      %cst_31 = arith.constant 9.99999997E-7 : f32
      %39 = vector.broadcast %cst_31 : f32 to vector<1x32xf32>
      %40 = arith.addf %33, %39 : vector<1x32xf32>
      %41 = arith.divf %36, %38 : vector<1x32xf32>
      %42 = arith.divf %36, %40 : vector<1x32xf32>
      %cst_32 = arith.constant 2.000000e+00 : f32
      %43 = vector.broadcast %cst_32 : f32 to vector<1x32xf32>
      %44 = arith.mulf %43, %41 : vector<1x32xf32>
      %45 = arith.mulf %44, %42 : vector<1x32xf32>
      %cst_33 = arith.constant 1.000000e+00 : f32
      %46 = vector.broadcast %cst_33 : f32 to vector<1x32xf32>
      %47 = arith.mulf %46, %41 : vector<1x32xf32>
      %48 = arith.addf %47, %42 : vector<1x32xf32>
      %cst_34 = arith.constant 9.99999997E-7 : f32
      %49 = vector.broadcast %cst_34 : f32 to vector<1x32xf32>
      %50 = arith.addf %48, %49 : vector<1x32xf32>
      %51 = arith.divf %45, %50 : vector<1x32xf32>
      %c0_35 = arith.constant 0 : index
      %c0_36 = arith.constant 0 : index
      %52 = vector.load %arg4[%c0_35, %c0_36] : memref<1x32xf32, #tpu.memory_space<vmem>>, vector<1x32xf32>
      tpu.vector_store %arg4[%c0_35, %c0_36], %51 {strides = array<i32>} : memref<1x32xf32, #tpu.memory_space<vmem>>, vector<1x32xf32>,
    } else {
    }
    return
  }
  func.func @transform_0(%arg0: i32, %arg1: i32) -> (i32, i32) {
    %c0_i32 = arith.constant 0 : i32
    return %arg1, %arg0 : i32, i32
  }
  func.func @transform_1(%arg0: i32, %arg1: i32) -> (i32, i32) {
    %c0_i32 = arith.constant 0 : i32
    return %arg1, %arg0 : i32, i32
  }
  func.func @transform_2(%arg0: i32, %arg1: i32) -> (i32, i32) {
    %c0_i32 = arith.constant 0 : i32
    %c0_i32_0 = arith.constant 0 : i32
    return %c0_i32, %arg0 : i32, i32
  }
}

</mosaic_0001>

<llo_original>
// kernel: tpu_custom_call.1
$region0: #{tpu_custom_call.1}
  #allocation0 [shape = 'u32[]', space=smem, size = 0x4, offset = 0x4, fixed_abs, tag = 'smem constant byte address 0x4 - core index']
  #allocation1 [shape = 'u32[144,128]{1,0:T(1,128)}', space=vmem, size = 0x12000, scoped, tag = 'internal scratch']
  #allocation2 [shape = 'f32[8,32]{1,0:T(8,128)}', space=vmem, size = 0x1000, scoped, tag = 'scratch operand']
  #allocation3 [shape = 'f32[8,32]{1,0:T(8,128)}', space=vmem, size = 0x1000, scoped, tag = 'scratch operand']
  #allocation4 [shape = 'f32[8,32]{1,0:T(8,128)}', space=vmem, size = 0x1000, scoped, tag = 'scratch operand']
  %s0 = inlined_call_operand.hbm [shape: f32[8,32], index: 0, kind: input, shape index: {}]
  %s1 = inlined_call_operand.hbm [shape: f32[8,32], index: 1, kind: input, shape index: {}]
  %s2 = inlined_call_operand.hbm [shape: f32[1,32], index: 2, kind: output, shape index: {}]
  %s3 = sld [smem:[#allocation0]]
  $region34: #{tpu_custom_call.1} parent=0
    _
  %s5 = ssub.s32 1, %s3
  %s6 = scalar_select 0, %s5, %s3
  $region1: #{tpu_custom_call.1} parent=0
    #allocation5 [shape = 'u8[4096]{0}', space=vmem, size = 0x1000, scoped, tag = 'input window, operand 0, single buffered']
    #allocation6 [shape = 's32[1]{0}', space=sflag, size = 0x4, scoped, tag = 'scoped memory for tpu_custom_call.1']
    #allocation7 [shape = 's32[1]{0}', space=sflag, size = 0x4, scoped, tag = 'scoped memory for tpu_custom_call.1']
    #allocation8 [shape = 'u8[4096]{0}', space=vmem, size = 0x1000, scoped, tag = 'input window, operand 1, single buffered']
    #allocation9 [shape = 's32[1]{0}', space=sflag, size = 0x4, scoped, tag = 'scoped memory for tpu_custom_call.1']
    #allocation10 [shape = 'u8[512]{0}', space=vmem, size = 0x400, scoped, tag = 'output window, operand 0, single buffered']
    %7 = vsyncpa [#allocation6], 0
    %8 = vsyncpa [#allocation9], 0
    %9 = vsyncpa [#allocation7], 0
    // Predicated region
    $region2: #{tpu_custom_call.1} parent=1 // pred_check
      _
    $region3: #{tpu_custom_call.1} parent=1 // pred_check_branch
      %11 = sbr.rel (0) target = $region5
    $region4: #{tpu_custom_call.1} parent=1 // pred_region
      %s13 = ssub.s32 128, 128
      %14 = vsyncadd [#allocation6], %s13
      %s16 = sshll.u32 [#allocation5], 4
      %s17 = int_to_ptr.vmem [resolvable:$true] %s16
      %19 = dma.hbm_to_vmem [thread:$0]  %s0, 128, %s17, [#allocation6]
    $region5: #{tpu_custom_call.1} parent=1 // pred_fallthru
      _
    // Predicated region
    $region6: #{tpu_custom_call.1} parent=1 // pred_check
      _
    $region7: #{tpu_custom_call.1} parent=1 // pred_check_branch
      %21 = sbr.rel (0) target = $region9
    $region8: #{tpu_custom_call.1} parent=1 // pred_region
      %s23 = ssub.s32 128, 128
      %24 = vsyncadd [#allocation9], %s23
      %s26 = sshll.u32 [#allocation8], 4
      %s27 = int_to_ptr.vmem [resolvable:$true] %s26
      %29 = dma.hbm_to_vmem [thread:$0]  %s1, 128, %s27, [#allocation9]
    $region9: #{tpu_custom_call.1} parent=1 // pred_fallthru
      _
    // Predicated region
    $region10: #{tpu_custom_call.1} parent=1 // pred_check
      _
    $region11: #{tpu_custom_call.1} parent=1 // pred_check_branch
      %31 = sbr.rel (0) target = $region13
    $region12: #{tpu_custom_call.1} parent=1 // pred_region
      %32 = dma.done [#allocation6], 128
    $region13: #{tpu_custom_call.1} parent=1 // pred_fallthru
      _
    // Predicated region
    $region14: #{tpu_custom_call.1} parent=1 // pred_check
      _
    $region15: #{tpu_custom_call.1} parent=1 // pred_check_branch
      %34 = sbr.rel (0) target = $region17
    $region16: #{tpu_custom_call.1} parent=1 // pred_region
      %35 = dma.done [#allocation9], 128
    $region17: #{tpu_custom_call.1} parent=1 // pred_fallthru
      _
    %p36 = scmp.eq.s32.totalorder 0, 0
    // Predicated region
    $region18: #{tpu_custom_call.1} parent=1 // pred_check
      %p37 = pneg %p36
    $region19: #{tpu_custom_call.1} parent=1 // pred_check_branch
      %39 = sbr.rel (%p37) target = $region21
    $region20: #{tpu_custom_call.1} parent=1 // pred_region
      %vm40 = vcmask 261120
      %41 = vst.msk [vmem:[#allocation2] sm:$0xff] %vm40, 0.0
      %42 = vst.msk [vmem:[#allocation3] sm:$0xff] %vm40, 0.0
      %43 = vst.msk [vmem:[#allocation4] sm:$0xff] %vm40, 0.0
    $region21: #{tpu_custom_call.1} parent=1 // pred_fallthru
      _
    %v44 = vld [vmem:[#allocation5] sm:$0xff]
    %v45 = vld [vmem:[#allocation8] sm:$0xff]
    %v46 = vxor.u32 %v44, 2147483648
    %v47 = vmul.f32 %v46, 1.442695
    %v48 = vpow.pop %v47
    %v49 = vadd.f32 %v48, 1.0
    %v50 = vrcp.pop %v49
    %v51 = vmul.f32 1.0, %v50
    %v52 = vld [vmem:[#allocation2] sm:$0xff]
    %v53 = vadd.f32 %v51, 0.0
    %v54 = vadd.f32 %v52, %v53
    %vm55 = vcmask 261120
    %56 = vst.msk [vmem:[#allocation2] sm:$0xff] %vm55, %v54
    %v57 = vld [vmem:[#allocation3] sm:$0xff]
    %v58 = vadd.f32 %v45, 0.0
    %v59 = vadd.f32 %v57, %v58
    %60 = vst.msk [vmem:[#allocation3] sm:$0xff] %vm55, %v59
    %v61 = vld [vmem:[#allocation4] sm:$0xff]
    %v62 = vmul.f32 %v45, %v51
    %v63 = vadd.f32 %v62, 0.0
    %v64 = vadd.f32 %v61, %v63
    %65 = vst.msk [vmem:[#allocation4] sm:$0xff] %vm55, %v64
    // Predicated region
    $region22: #{tpu_custom_call.1} parent=1 // pred_check
      %p66 = pneg %p36
    $region23: #{tpu_custom_call.1} parent=1 // pred_check_branch
      %68 = sbr.rel (%p66) target = $region25
    $region24: #{tpu_custom_call.1} parent=1 // pred_region
      %v69 = vld [vmem:[#allocation2] sm:$0xff]
      %v70 = vsel %vm55, %v69, 0.0
      %v71 = vrot.slane %v70, 4
      %v72 = vadd.f32 %v70, %v71
      %v73 = vrot.slane %v72, 2
      %v74 = vadd.f32 %v72, %v73
      %v75 = vrot.slane %v74, 1
      %v76 = vadd.f32 %v74, %v75
      %v77 = vld [vmem:[#allocation3] sm:$0xff]
      %v78 = vsel %vm55, %v77, 0.0
      %v79 = vrot.slane %v78, 4
      %v80 = vadd.f32 %v78, %v79
      %v81 = vrot.slane %v80, 2
      %v82 = vadd.f32 %v80, %v81
      %v83 = vrot.slane %v82, 1
      %v84 = vadd.f32 %v82, %v83
      %v85 = vld [vmem:[#allocation4] sm:$0xff]
      %v86 = vsel %vm55, %v85, 0.0
      %v87 = vrot.slane %v86, 4
      %v88 = vadd.f32 %v86, %v87
      %v89 = vrot.slane %v88, 2
      %v90 = vadd.f32 %v88, %v89
      %v91 = vrot.slane %v90, 1
      %v92 = vadd.f32 %v90, %v91
      %v93 = vadd.f32 %v76, 1e-06
      %v94 = vadd.f32 %v84, 1e-06
      %v95 = vrcp.pop %v93
      %v96 = vmul.f32 %v92, %v95
      %v97 = vrcp.pop %v94
      %v98 = vmul.f32 %v92, %v97
      %v99 = vmul.f32 %v96, 2.0
      %v100 = vmul.f32 %v99, %v98
      %v101 = vadd.f32 %v96, %v98
      %v102 = vadd.f32 %v101, 1e-06
      %v103 = vrcp.pop %v102
      %v104 = vmul.f32 %v100, %v103
      %vm105 = vcmask 253952
      %106 = vst.msk [vmem:[#allocation10] sm:$0x1] %vm105, %v104
    $region25: #{tpu_custom_call.1} parent=1 // pred_fallthru
      _
    // Predicated region
    $region26: #{tpu_custom_call.1} parent=1 // pred_check
      _
    $region27: #{tpu_custom_call.1} parent=1 // pred_check_branch
      %108 = sbr.rel (0) target = $region29
    $region28: #{tpu_custom_call.1} parent=1 // pred_region
      %s110 = ssub.s32 16, 16
      %111 = vsyncadd [#allocation7], %s110
      %s113 = sshll.u32 [#allocation10], 4
      %s114 = int_to_ptr.vmem [resolvable:$true] %s113
      %116 = dma.vmem_to_hbm [thread:$0]  %s114, 16, %s2, [#allocation7]
    $region29: #{tpu_custom_call.1} parent=1 // pred_fallthru
      _
    // Predicated region
    $region30: #{tpu_custom_call.1} parent=1 // pred_check
      _
    $region31: #{tpu_custom_call.1} parent=1 // pred_check_branch
      %118 = sbr.rel (0) target = $region33
    $region32: #{tpu_custom_call.1} parent=1 // pred_region
      %119 = dma.done [#allocation7], 16
    $region33: #{tpu_custom_call.1} parent=1 // pred_fallthru
      _
    %120 = vsyncpa [#allocation6], 1
    %121 = vsyncpa [#allocation9], 1
    %122 = vsyncpa [#allocation7], 1

</llo_original>
